<compile_context>
chip_gen: v5e
topology: v5e:2x2
jax: 0.10.0
libtpu: 0.0.40
codegen_flags: <defaults>
</compile_context>

<pallas_src>
import jax
import jax.numpy as jnp
from jax.experimental import pallas as pl
from jax.experimental.pallas import tpu as pltpu


def _concat_kernel(mean_ref, var_ref, o_ref):
    # mean_ref: (tb, D1), var_ref: (tb, D2), o_ref: (tb, D1 + D2)
    d1 = mean_ref.shape[-1]
    o_ref[:, :d1] = mean_ref[...]
    o_ref[:, d1:] = var_ref[...]


def shared_decoder_forward(mean, var, *, block_rows=None,
                           vmem_budget_bytes=8 * 1024 * 1024):
    """Forward pass of SharedDecoder: concat([mean, var], axis=1).

    Args:
      mean: (batch, D1) array.
      var:  (batch, D2) array, same batch size and dtype as `mean`.
      block_rows: optional explicit row-tile size (rounded to a legal value).
      vmem_budget_bytes: target double-buffered VMEM footprint of the tile
        pipeline (kept well under the 16 MiB scoped default of v5e).
    Returns:
      (batch, D1 + D2) array.
    """
    assert mean.ndim == 2 and var.ndim == 2
    b, d1 = mean.shape
    b2, d2 = var.shape
    assert b == b2, "mean / var batch sizes must match"
    assert mean.dtype == var.dtype
    d_out = d1 + d2

    itemsize = jnp.dtype(mean.dtype).itemsize
    # Sublane packing granularity: f32 -> 8 rows, bf16 -> 16, int8/fp8 -> 32.
    sublane = max(8, 32 // itemsize)

    if block_rows is None:
        # Per row of the batch we stage d1 + d2 = d_out input elements plus
        # d_out output elements, each double-buffered by the BlockSpec
        # pipeline: ~4 * d_out * itemsize bytes per row.
        rows = vmem_budget_bytes // max(1, 4 * d_out * itemsize)
        rows = (rows // sublane) * sublane
        block_rows = max(sublane, rows)

    # Clamp to the batch; a block smaller than the batch must be a sublane
    # multiple, a block equal to the batch (full array dim) is always legal.
    block_rows = min(block_rows, b)
    if block_rows < b:
        block_rows = max(sublane, (block_rows // sublane) * sublane)

    grid = (pl.cdiv(b, block_rows),)

    cost = pl.CostEstimate(
        flops=0,
        transcendentals=0,
        bytes_accessed=2 * b * d_out * itemsize,  # read mean+var, write out
    )

    out = pl.pallas_call(
        _concat_kernel,
        out_shape=jax.ShapeDtypeStruct((b, d_out), mean.dtype),
        grid_spec=pltpu.PrefetchScalarGridSpec(
            num_scalar_prefetch=0,
            grid=grid,
            in_specs=[
                # Full feature dim per block -> satisfies the (8,128) rule for
                # any D1/D2 and keeps loads/stores lane-contiguous.
                pl.BlockSpec((block_rows, d1), lambda i: (i, 0)),
                pl.BlockSpec((block_rows, d2), lambda i: (i, 0)),
            ],
            out_specs=pl.BlockSpec((block_rows, d_out), lambda i: (i, 0)),
        ),
        compiler_params=pltpu.CompilerParams(
            # Row tiles are independent: double-buffered DMA/compute overlap.
            dimension_semantics=("parallel",),
            # Explicit limit so the same budget compiles on v5e (16 MiB
            # scoped default) as well as v6e / v7x.
            vmem_limit_bytes=32 * 1024 * 1024,
        ),
        cost_estimate=cost,
    )(mean, var)
    return out


if __name__ == "__main__":
    key = jax.random.PRNGKey(0)
    k_m, k_v = jax.random.split(key, 2)

    # Small, lane-dense example consistent with the module's forward().
    batch = 8
    feat = 128  # multiple of 128 -> unmasked full-lane stores

    mean = jax.random.normal(k_m, (batch, feat), dtype=jnp.float32)
    var = jax.random.normal(k_v, (batch, feat), dtype=jnp.float32)

    out = shared_decoder_forward(mean, var)
    out = jax.block_until_ready(out)

    ref = jnp.concatenate([mean, var], axis=1)
    assert out.shape == (batch, 2 * feat)
    assert jnp.array_equal(out, ref)

    # Also exercise the cdiv / ragged-last-block path (batch not a multiple
    # of the row tile) to validate the budget-driven tiling logic.
    k_m2, k_v2 = jax.random.split(jax.random.PRNGKey(1), 2)
    batch2 = 20
    mean2 = jax.random.normal(k_m2, (batch2, feat), dtype=jnp.float32)
    var2 = jax.random.normal(k_v2, (batch2, feat), dtype=jnp.float32)
    out2 = jax.block_until_ready(
        shared_decoder_forward(mean2, var2, block_rows=8))
    ref2 = jnp.concatenate([mean2, var2], axis=1)
    assert out2.shape == (batch2, 2 * feat)
    assert jnp.array_equal(out2, ref2)

    print("KERNEL_OK")
</pallas_src>

<mosaic_0001>
module attributes {stable_mosaic.version = 11 : i64} {
  func.func @_concat_kernel(%arg0: i32, %arg1: memref<8x128xf32, #tpu.memory_space<vmem>>, %arg2: memref<8x128xf32, #tpu.memory_space<vmem>>, %arg3: memref<8x256xf32, #tpu.memory_space<vmem>>) attributes {dimension_semantics = [#tpu.dimension_semantics<parallel>], iteration_bounds = array<i64: 1>, scalar_prefetch = 0 : i64, scratch_operands = 0 : i64, tpu.core_type = #tpu.core_type<tc>, window_params = [{transform_indices = @transform_0, window_bounds = array<i64: 8, 128>}, {transform_indices = @transform_1, window_bounds = array<i64: 8, 128>}, {transform_indices = @transform_2, window_bounds = array<i64: 8, 256>}]} {
    %c0 = arith.constant 0 : index
    %c0_0 = arith.constant 0 : index
    %0 = vector.load %arg1[%c0, %c0_0] : memref<8x128xf32, #tpu.memory_space<vmem>>, vector<8x128xf32>
    %c0_1 = arith.constant 0 : index
    %c0_2 = arith.constant 0 : index
    %1 = vector.load %arg3[%c0_1, %c0_2] : memref<8x256xf32, #tpu.memory_space<vmem>>, vector<8x128xf32>
    tpu.vector_store %arg3[%c0_1, %c0_2], %0 {strides = array<i32>} : memref<8x256xf32, #tpu.memory_space<vmem>>, vector<8x128xf32>,
    %c0_3 = arith.constant 0 : index
    %c0_4 = arith.constant 0 : index
    %2 = vector.load %arg2[%c0_3, %c0_4] : memref<8x128xf32, #tpu.memory_space<vmem>>, vector<8x128xf32>
    %c0_5 = arith.constant 0 : index
    %c128 = arith.constant 128 : index
    %3 = vector.load %arg3[%c0_5, %c128] : memref<8x256xf32, #tpu.memory_space<vmem>>, vector<8x128xf32>
    tpu.vector_store %arg3[%c0_5, %c128], %2 {strides = array<i32>} : memref<8x256xf32, #tpu.memory_space<vmem>>, vector<8x128xf32>,
    return
  }
  func.func @transform_0(%arg0: i32) -> (i32, i32) {
    %c0_i32 = arith.constant 0 : i32
    %c0_i32_0 = arith.constant 0 : i32
    return %arg0, %c0_i32 : i32, i32
  }
  func.func @transform_1(%arg0: i32) -> (i32, i32) {
    %c0_i32 = arith.constant 0 : i32
    %c0_i32_0 = arith.constant 0 : i32
    return %arg0, %c0_i32 : i32, i32
  }
  func.func @transform_2(%arg0: i32) -> (i32, i32) {
    %c0_i32 = arith.constant 0 : i32
    %c0_i32_0 = arith.constant 0 : i32
    return %arg0, %c0_i32 : i32, i32
  }
}

</mosaic_0001>

<llo_original>
// kernel: tpu_custom_call.1
$region0: #{tpu_custom_call.1}
  #allocation0 [shape = 'u32[]', space=smem, size = 0x4, offset = 0x4, fixed_abs, tag = 'smem constant byte address 0x4 - core index']
  #allocation1 [shape = 'u32[72,128]{1,0:T(1,128)}', space=vmem, size = 0x9000, scoped, tag = 'internal scratch']
  %s0 = inlined_call_operand.hbm [shape: f32[8,128], index: 0, kind: input, shape index: {}]
  %s1 = inlined_call_operand.hbm [shape: f32[8,128], index: 1, kind: input, shape index: {}]
  %s2 = inlined_call_operand.hbm [shape: f32[8,256], index: 2, kind: output, shape index: {}]
  %s3 = sld [smem:[#allocation0]]
  $region26: #{tpu_custom_call.1} parent=0
    _
  %s5 = ssub.s32 1, %s3
  %s6 = scalar_select 0, %s5, %s3
  $region1: #{tpu_custom_call.1} parent=0
    #allocation2 [shape = 'u8[4096]{0}', space=vmem, size = 0x1000, scoped, tag = 'input window, operand 0, single buffered']
    #allocation3 [shape = 's32[1]{0}', space=sflag, size = 0x4, scoped, tag = 'scoped memory for tpu_custom_call.1']
    #allocation4 [shape = 's32[1]{0}', space=sflag, size = 0x4, scoped, tag = 'scoped memory for tpu_custom_call.1']
    #allocation5 [shape = 'u8[4096]{0}', space=vmem, size = 0x1000, scoped, tag = 'input window, operand 1, single buffered']
    #allocation6 [shape = 's32[1]{0}', space=sflag, size = 0x4, scoped, tag = 'scoped memory for tpu_custom_call.1']
    #allocation7 [shape = 'u8[8192]{0}', space=vmem, size = 0x2000, scoped, tag = 'output window, operand 0, single buffered']
    %7 = vsyncpa [#allocation3], 0
    %8 = vsyncpa [#allocation6], 0
    %9 = vsyncpa [#allocation4], 0
    // Predicated region
    $region2: #{tpu_custom_call.1} parent=1 // pred_check
      _
    $region3: #{tpu_custom_call.1} parent=1 // pred_check_branch
      %11 = sbr.rel (0) target = $region5
    $region4: #{tpu_custom_call.1} parent=1 // pred_region
      %13 = vsyncadd [#allocation3], 0
      %s15 = sshll.u32 %s0, 4
      %s16 = int_to_ptr.hbm [resolvable:$true] %s15
      %s17 = sshll.u32 [#allocation2], 4
      %s18 = int_to_ptr.vmem [resolvable:$true] %s17
      %20 = dma.hbm_to_vmem [thread:$0]  %s16, 128, %s18, [#allocation3]
    $region5: #{tpu_custom_call.1} parent=1 // pred_fallthru
      _
    // Predicated region
    $region6: #{tpu_custom_call.1} parent=1 // pred_check
      _
    $region7: #{tpu_custom_call.1} parent=1 // pred_check_branch
      %22 = sbr.rel (0) target = $region9
    $region8: #{tpu_custom_call.1} parent=1 // pred_region
      %24 = vsyncadd [#allocation6], 0
      %s26 = sshll.u32 %s1, 4
      %s27 = int_to_ptr.hbm [resolvable:$true] %s26
      %s28 = sshll.u32 [#allocation5], 4
      %s29 = int_to_ptr.vmem [resolvable:$true] %s28
      %31 = dma.hbm_to_vmem [thread:$0]  %s27, 128, %s29, [#allocation6]
    $region9: #{tpu_custom_call.1} parent=1 // pred_fallthru
      _
    // Predicated region
    $region10: #{tpu_custom_call.1} parent=1 // pred_check
      _
    $region11: #{tpu_custom_call.1} parent=1 // pred_check_branch
      %33 = sbr.rel (0) target = $region13
    $region12: #{tpu_custom_call.1} parent=1 // pred_region
      %35 = dma.done [#allocation3], 128
    $region13: #{tpu_custom_call.1} parent=1 // pred_fallthru
      _
    // Predicated region
    $region14: #{tpu_custom_call.1} parent=1 // pred_check
      _
    $region15: #{tpu_custom_call.1} parent=1 // pred_check_branch
      %37 = sbr.rel (0) target = $region17
    $region16: #{tpu_custom_call.1} parent=1 // pred_region
      %39 = dma.done [#allocation6], 128
    $region17: #{tpu_custom_call.1} parent=1 // pred_fallthru
      _
    %v40 = vld [vmem:[#allocation2] sm:$0xff]
    %41 = vst [vmem:[#allocation7] sm:$0xff] %v40
    %v42 = vld [vmem:[#allocation5] sm:$0xff]
    %43 = vst [vmem:[#allocation7 + $0x8] sm:$0xff] %v42
    // Predicated region
    $region18: #{tpu_custom_call.1} parent=1 // pred_check
      _
    $region19: #{tpu_custom_call.1} parent=1 // pred_check_branch
      %45 = sbr.rel (0) target = $region21
    $region20: #{tpu_custom_call.1} parent=1 // pred_region
      %47 = vsyncadd [#allocation4], 0
      %s49 = sshll.u32 [#allocation7], 4
      %s50 = int_to_ptr.vmem [resolvable:$true] %s49
      %s51 = sshll.u32 %s2, 4
      %s52 = int_to_ptr.hbm [resolvable:$true] %s51
      %54 = dma.vmem_to_hbm [thread:$0]  %s50, 256, %s52, [#allocation4]
    $region21: #{tpu_custom_call.1} parent=1 // pred_fallthru
      _
    // Predicated region
    $region22: #{tpu_custom_call.1} parent=1 // pred_check
      _
    $region23: #{tpu_custom_call.1} parent=1 // pred_check_branch
      %56 = sbr.rel (0) target = $region25
    $region24: #{tpu_custom_call.1} parent=1 // pred_region
      %58 = dma.done [#allocation4], 256
    $region25: #{tpu_custom_call.1} parent=1 // pred_fallthru
      _
    %59 = vsyncpa [#allocation3], 1
    %60 = vsyncpa [#allocation6], 1
    %61 = vsyncpa [#allocation4], 1

</llo_original>
